<compile_context>
chip_gen: v5e
topology: v5e:2x2
jax: 0.10.0
libtpu: 0.0.40
codegen_flags: <defaults>
</compile_context>

<pallas_src>
import functools

import jax
import jax.numpy as jnp
from jax.experimental import pallas as pl
from jax.experimental.pallas import tpu as pltpu

NUM_ASPECTS = 5
H1 = 10
EMBED_DIM = 300
CTX_WIN = 3


def _arl_kernel(doc_ref, w_ref, attn_ref, rep_ref, *, l_valid):
    # doc_ref : (TB, Lp, D)  compute-dtype batch tile of the zero-padded doc
    # w_ref   : (D, C)       fused weights; lanes [0:3A]  = score taps (k-major),
    #                                       lanes [3A: ]  = projection columns
    # attn_ref: (TB, A, Lp)  f32 attention (PyTorch layout, L lane-dense)
    # rep_ref : (TB, A, H)   f32 aspect representations
    TB, Lp, D = doc_ref.shape
    A = attn_ref.shape[1]
    H = rep_ref.shape[2]
    nt = CTX_WIN * A                                   # 15 score-tap lanes
    C = w_ref.shape[1]

    # One fused MXU pass for all 5 aspects (score taps + projections).
    doc2d = doc_ref[...].reshape(TB * Lp, D)
    fused = jnp.dot(doc2d, w_ref[...],
                    preferred_element_type=jnp.float32)            # (TB*Lp, C) f32
    fused3 = fused.reshape(TB, Lp, C)                              # clean: Lp % 8 == 0

    # ---- scores --------------------------------------------------------------
    # Single relayout of the 15 tap columns to the lane-dense (TB, 15, Lp) form
    # (replaces 15 per-column extractions); taps are combined with +/-1 shifts
    # along the (lane) sequence axis on this small 15-row slab.
    sc_t = jnp.transpose(fused3[:, :, :nt], (0, 2, 1))             # (TB, 3A, Lp)
    s_prev = sc_t[:, 0 * A:1 * A, :]   # doc[t] @ (P e0) -> contributes to score[t+1]
    s_cent = sc_t[:, 1 * A:2 * A, :]   # doc[t] @ (P e1) -> contributes to score[t]
    s_next = sc_t[:, 2 * A:3 * A, :]   # doc[t] @ (P e2) -> contributes to score[t-1]
    zcol = jnp.zeros((TB, A, 1), jnp.float32)
    score = (s_cent
             + jnp.concatenate([zcol, s_prev[:, :, :Lp - 1]], axis=2)
             + jnp.concatenate([s_next[:, :, 1:], zcol], axis=2))  # (TB, A, Lp)

    if l_valid < Lp:
        # Padded sequence positions must not take softmax mass (the +1 shift
        # leaks a real score into the first padded slot).
        pos = jax.lax.broadcasted_iota(jnp.int32, (TB, A, Lp), 2)
        score = jnp.where(pos < l_valid, score, jnp.float32(-1e30))

    # softmax over the sequence axis (PyTorch softmax(dim=1) over L)
    m = jnp.max(score, axis=2, keepdims=True)
    e = jnp.exp(score - m)
    attn = e / jnp.sum(e, axis=2, keepdims=True)                   # (TB, A, Lp) f32
    attn_ref[...] = attn

    # ---- aspect representations ---------------------------------------------
    # One batched MXU contraction for all aspects (instead of A tiny matvecs);
    # each aspect's representation is the (a, proj-block-a) diagonal slice.
    rep_all = jnp.einsum('bal,blc->bac', attn, fused3,
                         preferred_element_type=jnp.float32)       # (TB, A, C)
    for a in range(A):
        rep_ref[:, a, :] = rep_all[:, a, nt + a * H: nt + (a + 1) * H]


def _default_vmem_limit_bytes():
    # ~3/4 of physical VMEM (v5e/v6e: 96 MiB, v7x per-TC: 48 MiB); safe fallback.
    try:
        cap = getattr(pltpu.get_tpu_info(), "vmem_capacity_bytes", None)
        if cap:
            return int(cap) * 3 // 4
    except Exception:
        pass
    return 64 * 1024 * 1024


def arl_forward(batch_docIn, aspects_projection, aspects_embeddings, *,
                tb=16, compute_dtype=jnp.bfloat16, vmem_limit_bytes=None):
    """ARL forward.

    batch_docIn:        (B, L, D) f32
    aspects_projection: (A, D, H) f32
    aspects_embeddings: (A, 3*H)  f32
    Returns (attn (B, A, L) f32, rep (B, A, H) f32).

    The doc is cast to `compute_dtype` (default bf16 -> ~2x less HBM traffic)
    and zero-padded along L; XLA fuses the convert+pad into one pass, and in a
    real model the producer should emit bf16/padded docs directly.
    tb guidance: 16 is safe on all generations; v6e can use 32 (128 MiB VMEM),
    keep <=16 f32 / <=32 bf16 on v7x (64 MiB per-TC VMEM).
    """
    B, L, D = batch_docIn.shape
    A, _, H = aspects_projection.shape
    emb3 = aspects_embeddings.reshape(A, CTX_WIN, H)

    # Fused weight matrix (D, 3A + A*H):
    #   lane [k*A + a]       = P[a] @ e3[a, k]   (score tap columns, k-major)
    #   lane [3A + a*H + h]  = P[a][:, h]        (projection columns, a-major)
    score_cols = jnp.einsum('adh,akh->dka', aspects_projection,
                            emb3).reshape(D, CTX_WIN * A)
    proj_cols = jnp.transpose(aspects_projection, (1, 0, 2)).reshape(D, A * H)
    w_fused = jnp.concatenate([score_cols, proj_cols], axis=1).astype(compute_dtype)
    C = CTX_WIN * A + A * H

    # Pad L: multiple of 8 keeps in-kernel reshapes clean sublane splits;
    # multiples of 128 for long docs (500 -> 512) make attn stores lane-dense.
    mult = 128 if L >= 128 else 8
    Lp = -(-L // mult) * mult

    # Batch tiling; keep >= 2 grid steps when possible so the "parallel" axis
    # can be sharded across both v7x TensorCores.
    tb_eff = max(1, min(tb, B, -(-B // 2)))
    grid_b = -(-B // tb_eff)
    Bp = grid_b * tb_eff

    doc = batch_docIn.astype(compute_dtype)
    if Bp != B or Lp != L:
        # Padded batch rows yield a uniform softmax over the valid positions and
        # zero reps; both are sliced away below (do not reduce over them).
        doc = jnp.pad(doc, ((0, Bp - B), (0, Lp - L), (0, 0)))

    if vmem_limit_bytes is None:
        vmem_limit_bytes = _default_vmem_limit_bytes()

    kernel = functools.partial(_arl_kernel, l_valid=L)

    attn, rep = pl.pallas_call(
        kernel,
        out_shape=(
            jax.ShapeDtypeStruct((Bp, A, Lp), jnp.float32),
            jax.ShapeDtypeStruct((Bp, A, H), jnp.float32),
        ),
        grid_spec=pltpu.PrefetchScalarGridSpec(
            num_scalar_prefetch=0,
            grid=(grid_b,),
            in_specs=[
                pl.BlockSpec((tb_eff, Lp, D), lambda i: (i, 0, 0)),
                pl.BlockSpec((D, C), lambda i: (0, 0)),
            ],
            out_specs=[
                pl.BlockSpec((tb_eff, A, Lp), lambda i: (i, 0, 0)),
                pl.BlockSpec((tb_eff, A, H), lambda i: (i, 0, 0)),
            ],
        ),
        compiler_params=pltpu.CompilerParams(
            dimension_semantics=("parallel",),
            vmem_limit_bytes=vmem_limit_bytes,
        ),
    )(doc, w_fused)

    if Bp != B or Lp != L:
        attn = attn[:B, :, :L]
        rep = rep[:B]
    return attn, rep


def arl_reference(batch_docIn, aspects_projection, aspects_embeddings):
    """Pure-JAX reference mirroring the PyTorch forward (pad+unfold version)."""
    B, L, D = batch_docIn.shape
    A, _, H = aspects_projection.shape
    attns, reps = [], []
    for a in range(A):
        p = batch_docIn @ aspects_projection[a]                  # (B, L, H)
        padded = jnp.pad(p, ((0, 0), (1, 1), (0, 0)))
        win = jnp.stack([padded[:, k:k + L, :] for k in range(CTX_WIN)],
                        axis=2)                                  # (B, L, 3, H)
        win = win.reshape(B, L, CTX_WIN * H)
        score = win @ aspects_embeddings[a]                      # (B, L)
        attn = jax.nn.softmax(score, axis=1)
        rep = jnp.sum(p * attn[:, :, None], axis=1)              # (B, H)
        attns.append(attn)
        reps.append(rep)
    return jnp.stack(attns, axis=1), jnp.stack(reps, axis=1)


if __name__ == "__main__":
    # Small synthetic test.  L deliberately not a multiple of 8 so the
    # L-padding + mask path is exercised; B=5 exercises batch padding.
    B, L = 5, 19
    key = jax.random.PRNGKey(0)
    k_doc, k_emb, k_proj = jax.random.split(key, 3)

    batch_docIn = jax.random.normal(k_doc, (B, L, EMBED_DIM), jnp.float32)
    # parameter init: uniform(-0.01, 0.01) as in the module
    aspects_embeddings = jax.random.uniform(
        k_emb, (NUM_ASPECTS, CTX_WIN * H1), jnp.float32, -0.01, 0.01)
    aspects_projection = jax.random.uniform(
        k_proj, (NUM_ASPECTS, EMBED_DIM, H1), jnp.float32, -0.01, 0.01)

    attn_ref, rep_ref = arl_reference(batch_docIn, aspects_projection,
                                      aspects_embeddings)

    # f32 path with tb=2: multi-step grid + batch padding; tight tolerance.
    attn32, rep32 = arl_forward(batch_docIn, aspects_projection,
                                aspects_embeddings, tb=2,
                                compute_dtype=jnp.float32)
    jax.block_until_ready((attn32, rep32))
    assert attn32.shape == (B, NUM_ASPECTS, L)
    assert rep32.shape == (B, NUM_ASPECTS, H1)
    assert jnp.allclose(attn32, attn_ref, atol=5e-5, rtol=5e-5)
    assert jnp.allclose(rep32, rep_ref, atol=5e-5, rtol=5e-5)

    # Default bf16 streaming path: same semantics, looser tolerance.
    attn16, rep16 = arl_forward(batch_docIn, aspects_projection,
                                aspects_embeddings)
    jax.block_until_ready((attn16, rep16))
    assert attn16.shape == (B, NUM_ASPECTS, L)
    assert rep16.shape == (B, NUM_ASPECTS, H1)
    assert jnp.allclose(attn16, attn_ref, atol=5e-3, rtol=5e-2)
    assert jnp.allclose(rep16, rep_ref, atol=5e-3, rtol=5e-2)

    print("KERNEL_OK")
</pallas_src>

<mosaic_0001>
module attributes {stable_mosaic.version = 11 : i64} {
  func.func @_arl_kernel(%arg0: i32, %arg1: memref<2x24x300xf32, #tpu.memory_space<vmem>>, %arg2: memref<300x65xf32, #tpu.memory_space<vmem>>, %arg3: memref<2x5x24xf32, #tpu.memory_space<vmem>>, %arg4: memref<2x5x10xf32, #tpu.memory_space<vmem>>) attributes {dimension_semantics = [#tpu.dimension_semantics<parallel>], iteration_bounds = array<i64: 3>, scalar_prefetch = 0 : i64, scratch_operands = 0 : i64, tpu.core_type = #tpu.core_type<tc>, window_params = [{transform_indices = @transform_0, window_bounds = array<i64: 2, 24, 300>}, {pipeline_mode = #tpu.pipeline_mode<synchronous>, transform_indices = @transform_1, window_bounds = array<i64: 300, 65>}, {transform_indices = @transform_2, window_bounds = array<i64: 2, 5, 24>}, {transform_indices = @transform_3, window_bounds = array<i64: 2, 5, 10>}]} {
    %c0 = arith.constant 0 : index
    %c0_0 = arith.constant 0 : index
    %c0_1 = arith.constant 0 : index
    %0 = vector.load %arg1[%c0, %c0_0, %c0_1] : memref<2x24x300xf32, #tpu.memory_space<vmem>>, vector<2x24x300xf32>
    %1 = vector.shape_cast %0 : vector<2x24x300xf32> to vector<48x300xf32>
    %c0_2 = arith.constant 0 : index
    %c0_3 = arith.constant 0 : index
    %2 = vector.load %arg2[%c0_2, %c0_3] : memref<300x65xf32, #tpu.memory_space<vmem>>, vector<300x65xf32>
    %cst = arith.constant dense<0.000000e+00> : vector<48x65xf32>
    %3 = tpu.matmul %1, %2, %cst {dimension_numbers = #tpu.dot_dimension_numbers<[1], [0], [0], [1], [0, 0, 1, 1], [], []>} : vector<48x300xf32>, vector<300x65xf32>, vector<48x65xf32> -> vector<48x65xf32>
    %4 = vector.shape_cast %3 : vector<48x65xf32> to vector<2x24x65xf32>
    %5 = vector.extract_strided_slice %4 {offsets = [0, 0, 0], sizes = [2, 24, 15], strides = [1, 1, 1]} : vector<2x24x65xf32> to vector<2x24x15xf32>
    %6 = tpu.transpose %5, [0, 2, 1] : vector<2x24x15xf32> -> vector<2x15x24xf32>
    %7 = vector.extract_strided_slice %6 {offsets = [0, 0, 0], sizes = [2, 5, 24], strides = [1, 1, 1]} : vector<2x15x24xf32> to vector<2x5x24xf32>
    %8 = vector.extract_strided_slice %6 {offsets = [0, 5, 0], sizes = [2, 5, 24], strides = [1, 1, 1]} : vector<2x15x24xf32> to vector<2x5x24xf32>
    %9 = vector.extract_strided_slice %6 {offsets = [0, 10, 0], sizes = [2, 5, 24], strides = [1, 1, 1]} : vector<2x15x24xf32> to vector<2x5x24xf32>
    %cst_4 = arith.constant 0.000000e+00 : f32
    %10 = vector.broadcast %cst_4 : f32 to vector<2x5x1xf32>
    %11 = vector.extract_strided_slice %7 {offsets = [0, 0, 0], sizes = [2, 5, 23], strides = [1, 1, 1]} : vector<2x5x24xf32> to vector<2x5x23xf32>
    %12 = tpu.concatenate %10, %11 in 2 : vector<2x5x1xf32>, vector<2x5x23xf32> -> vector<2x5x24xf32>
    %13 = arith.addf %8, %12 : vector<2x5x24xf32>
    %14 = vector.extract_strided_slice %9 {offsets = [0, 0, 1], sizes = [2, 5, 23], strides = [1, 1, 1]} : vector<2x5x24xf32> to vector<2x5x23xf32>
    %15 = tpu.concatenate %14, %10 in 2 : vector<2x5x23xf32>, vector<2x5x1xf32> -> vector<2x5x24xf32>
    %16 = arith.addf %13, %15 : vector<2x5x24xf32>
    %17 = tpu.iota {dimensions = array<i32: 2>} : vector<2x5x24xi32>
    %c19_i32 = arith.constant 19 : i32
    %18 = vector.broadcast %c19_i32 : i32 to vector<2x5x24xi32>
    %19 = arith.cmpi slt, %17, %18 : vector<2x5x24xi32>
    %cst_5 = arith.constant -1.000000e+30 : f32
    %20 = vector.broadcast %cst_5 : f32 to vector<2x5x24xf32>
    %21 = arith.select %19, %16, %20 : vector<2x5x24xi1>, vector<2x5x24xf32>
    %cst_6 = arith.constant dense<0xFF800000> : vector<2x5xf32>
    %22 = vector.multi_reduction <maximumf>, %21, %cst_6 [2] : vector<2x5x24xf32> to vector<2x5xf32>
    %23 = vector.shape_cast %22 : vector<2x5xf32> to vector<2x5x1xf32>
    %24 = vector.broadcast %23 : vector<2x5x1xf32> to vector<2x5x24xf32>
    %25 = arith.subf %21, %24 : vector<2x5x24xf32>
    %26 = math.exp %25 : vector<2x5x24xf32>
    %cst_7 = arith.constant dense<0.000000e+00> : vector<2x5xf32>
    %27 = vector.multi_reduction <add>, %26, %cst_7 [2] : vector<2x5x24xf32> to vector<2x5xf32>
    %28 = vector.shape_cast %27 : vector<2x5xf32> to vector<2x5x1xf32>
    %29 = vector.broadcast %28 : vector<2x5x1xf32> to vector<2x5x24xf32>
    %30 = arith.divf %26, %29 : vector<2x5x24xf32>
    %c0_8 = arith.constant 0 : index
    %c0_9 = arith.constant 0 : index
    %c0_10 = arith.constant 0 : index
    %31 = vector.load %arg3[%c0_8, %c0_9, %c0_10] : memref<2x5x24xf32, #tpu.memory_space<vmem>>, vector<2x5x24xf32>
    tpu.vector_store %arg3[%c0_8, %c0_9, %c0_10], %30 {strides = array<i32>} : memref<2x5x24xf32, #tpu.memory_space<vmem>>, vector<2x5x24xf32>,
    "tpu.trace_start"() <{level = 10 : i32, message = "bal,blc->bac"}> : () -> ()
    %cst_11 = arith.constant dense<0.000000e+00> : vector<2x5x65xf32>
    %32 = tpu.matmul %30, %4, %cst_11 {dimension_numbers = #tpu.dot_dimension_numbers<[2], [1], [1], [2], [0, 0, 0, 1, 1, 2], [0], [0]>} : vector<2x5x24xf32>, vector<2x24x65xf32>, vector<2x5x65xf32> -> vector<2x5x65xf32>
    "tpu.trace_stop"() : () -> ()
    %33 = vector.extract_strided_slice %32 {offsets = [0, 0, 15], sizes = [2, 1, 10], strides = [1, 1, 1]} : vector<2x5x65xf32> to vector<2x1x10xf32>
    %34 = vector.shape_cast %33 : vector<2x1x10xf32> to vector<2x10xf32>
    %c0_12 = arith.constant 0 : index
    %c0_13 = arith.constant 0 : index
    %c0_14 = arith.constant 0 : index
    %35 = vector.load %arg4[%c0_12, %c0_13, %c0_14] : memref<2x5x10xf32, #tpu.memory_space<vmem>>, vector<2x1x10xf32>
    %36 = vector.shape_cast %35 : vector<2x1x10xf32> to vector<2x10xf32>
    %37 = vector.shape_cast %34 : vector<2x10xf32> to vector<2x1x10xf32>
    tpu.vector_store %arg4[%c0_12, %c0_13, %c0_14], %37 {strides = array<i32>} : memref<2x5x10xf32, #tpu.memory_space<vmem>>, vector<2x1x10xf32>,
    %38 = vector.extract_strided_slice %32 {offsets = [0, 1, 25], sizes = [2, 1, 10], strides = [1, 1, 1]} : vector<2x5x65xf32> to vector<2x1x10xf32>
    %39 = vector.shape_cast %38 : vector<2x1x10xf32> to vector<2x10xf32>
    %c0_15 = arith.constant 0 : index
    %c1 = arith.constant 1 : index
    %c0_16 = arith.constant 0 : index
    %40 = vector.load %arg4[%c0_15, %c1, %c0_16] : memref<2x5x10xf32, #tpu.memory_space<vmem>>, vector<2x1x10xf32>
    %41 = vector.shape_cast %40 : vector<2x1x10xf32> to vector<2x10xf32>
    %42 = vector.shape_cast %39 : vector<2x10xf32> to vector<2x1x10xf32>
    tpu.vector_store %arg4[%c0_15, %c1, %c0_16], %42 {strides = array<i32>} : memref<2x5x10xf32, #tpu.memory_space<vmem>>, vector<2x1x10xf32>,
    %43 = vector.extract_strided_slice %32 {offsets = [0, 2, 35], sizes = [2, 1, 10], strides = [1, 1, 1]} : vector<2x5x65xf32> to vector<2x1x10xf32>
    %44 = vector.shape_cast %43 : vector<2x1x10xf32> to vector<2x10xf32>
    %c0_17 = arith.constant 0 : index
    %c2 = arith.constant 2 : index
    %c0_18 = arith.constant 0 : index
    %45 = vector.load %arg4[%c0_17, %c2, %c0_18] : memref<2x5x10xf32, #tpu.memory_space<vmem>>, vector<2x1x10xf32>
    %46 = vector.shape_cast %45 : vector<2x1x10xf32> to vector<2x10xf32>
    %47 = vector.shape_cast %44 : vector<2x10xf32> to vector<2x1x10xf32>
    tpu.vector_store %arg4[%c0_17, %c2, %c0_18], %47 {strides = array<i32>} : memref<2x5x10xf32, #tpu.memory_space<vmem>>, vector<2x1x10xf32>,
    %48 = vector.extract_strided_slice %32 {offsets = [0, 3, 45], sizes = [2, 1, 10], strides = [1, 1, 1]} : vector<2x5x65xf32> to vector<2x1x10xf32>
    %49 = vector.shape_cast %48 : vector<2x1x10xf32> to vector<2x10xf32>
    %c0_19 = arith.constant 0 : index
    %c3 = arith.constant 3 : index
    %c0_20 = arith.constant 0 : index
    %50 = vector.load %arg4[%c0_19, %c3, %c0_20] : memref<2x5x10xf32, #tpu.memory_space<vmem>>, vector<2x1x10xf32>
    %51 = vector.shape_cast %50 : vector<2x1x10xf32> to vector<2x10xf32>
    %52 = vector.shape_cast %49 : vector<2x10xf32> to vector<2x1x10xf32>
    tpu.vector_store %arg4[%c0_19, %c3, %c0_20], %52 {strides = array<i32>} : memref<2x5x10xf32, #tpu.memory_space<vmem>>, vector<2x1x10xf32>,
    %53 = vector.extract_strided_slice %32 {offsets = [0, 4, 55], sizes = [2, 1, 10], strides = [1, 1, 1]} : vector<2x5x65xf32> to vector<2x1x10xf32>
    %54 = vector.shape_cast %53 : vector<2x1x10xf32> to vector<2x10xf32>
    %c0_21 = arith.constant 0 : index
    %c4 = arith.constant 4 : index
    %c0_22 = arith.constant 0 : index
    %55 = vector.load %arg4[%c0_21, %c4, %c0_22] : memref<2x5x10xf32, #tpu.memory_space<vmem>>, vector<2x1x10xf32>
    %56 = vector.shape_cast %55 : vector<2x1x10xf32> to vector<2x10xf32>
    %57 = vector.shape_cast %54 : vector<2x10xf32> to vector<2x1x10xf32>
    tpu.vector_store %arg4[%c0_21, %c4, %c0_22], %57 {strides = array<i32>} : memref<2x5x10xf32, #tpu.memory_space<vmem>>, vector<2x1x10xf32>,
    return
  }
  func.func @transform_0(%arg0: i32) -> (i32, i32, i32) {
    %c0_i32 = arith.constant 0 : i32
    %c0_i32_0 = arith.constant 0 : i32
    %c0_i32_1 = arith.constant 0 : i32
    return %arg0, %c0_i32, %c0_i32_0 : i32, i32, i32
  }
  func.func @transform_1(%arg0: i32) -> (i32, i32) {
    %c0_i32 = arith.constant 0 : i32
    %c0_i32_0 = arith.constant 0 : i32
    %c0_i32_1 = arith.constant 0 : i32
    return %c0_i32, %c0_i32_0 : i32, i32
  }
  func.func @transform_2(%arg0: i32) -> (i32, i32, i32) {
    %c0_i32 = arith.constant 0 : i32
    %c0_i32_0 = arith.constant 0 : i32
    %c0_i32_1 = arith.constant 0 : i32
    return %arg0, %c0_i32, %c0_i32_0 : i32, i32, i32
  }
  func.func @transform_3(%arg0: i32) -> (i32, i32, i32) {
    %c0_i32 = arith.constant 0 : i32
    %c0_i32_0 = arith.constant 0 : i32
    %c0_i32_1 = arith.constant 0 : i32
    return %arg0, %c0_i32, %c0_i32_0 : i32, i32, i32
  }
}

</mosaic_0001>

<llo_original>
// kernel: tpu_custom_call.1
$region0: #{tpu_custom_call.1}
  #allocation0 [shape = 'u32[]', space=smem, size = 0x4, offset = 0x4, fixed_abs, tag = 'smem constant byte address 0x4 - core index']
  #allocation1 [shape = 'u32[72,128]{1,0:T(1,128)}', space=vmem, size = 0x9000, scoped, tag = 'internal scratch']
  %s0 = inlined_call_operand.vmem [shape: f32[6,24,300], index: 0, kind: input, shape index: {}]
  %s1 = inlined_call_operand.vmem [shape: f32[300,65], index: 1, kind: input, shape index: {}]
  %s2 = inlined_call_operand.vmem [shape: f32[6,5,24], index: 2, kind: output, shape index: {0}]
  %s3 = inlined_call_operand.vmem [shape: f32[6,5,10], index: 3, kind: output, shape index: {1}]
  %4 = xla_tuple %s2, %s3
  %s5 = sld [smem:[#allocation0]]
  $region49: #{tpu_custom_call.1} parent=0
    _
  %s7 = ssub.s32 1, %s5
  %s8 = scalar_select 0, %s7, %s5
  loop: start=0, step=1, limit=5
  $region2: #{tpu_custom_call.1} parent=0 // loop_pre_header
    _
  $region3: #{tpu_custom_call.1} parent=0 // loop_header
    %s10 = sphi 0, %s14
    %p11 = scmp.ge.s32.totalorder %s10, 5
    %s20 = sphi 0, %s22
    %s23 = sphi 0, %s20
    %s24 = sphi 0, %s23
    %s40 = sphi 0, %s24
    %s44 = sphi 0, %s44
    %s46 = sphi 0, %s44
    %s47 = sphi 0, %s46
    %s61 = sphi 0, %s47
    %s67 = sphi 0, %s69
    %s70 = sphi 0, %s67
    %s71 = sphi 0, %s70
    %s87 = sphi 0, %s71
    %s93 = sphi 0, %s95
    %s96 = sphi 0, %s93
    %s97 = sphi 0, %s96
    %s113 = sphi 0, %s97
  $region4: #{tpu_custom_call.1} parent=0 // loop_header_branch
    %13 = sbr.rel (%p11) target = $region8
  $region5: #{tpu_custom_call.1} parent=0 // loop_body
    %s15 = ssub.s32 %s10, 1
    %s16 = ssub.s32 %s10, 2
    %s17 = sadd.s32 %s10, 1
    %s18 = ssub.s32 %s10, %s17
    %p19 = scmp.eq.s32.totalorder %s18, 0
    %s21 = sadd.s32 %s20, 1
    %s22 = scalar_select %p19, %s20, %s21
    %p25 = pneg %p19
    %p26 = scmp.eq.s32.totalorder %s10, 2
    %p27 = por %p25, %p26
    %p28 = scmp.ne.s32.totalorder %s20, %s23
    %p29 = scmp.eq.s32.totalorder %s10, 0
    %p30 = por %p28, %p29
    %p31 = scmp.ne.s32.totalorder %s20, %s23
    %p32 = scmp.eq.s32.totalorder %s15, 2
    %p33 = por %p31, %p32
    %p34 = scmp.ne.s32.totalorder %s23, %s24
    %p35 = scmp.eq.s32.totalorder %s15, 0
    %p36 = por %p34, %p35
    %p37 = scmp.ne.s32.totalorder %s23, %s24
    %p38 = scmp.eq.s32.totalorder %s16, 2
    %p39 = por %p37, %p38
    %p41 = scmp.ne.s32.totalorder %s24, %s40
    %p42 = scmp.eq.s32.totalorder %s16, 0
    %p43 = por %p41, %p42
    %s45 = sadd.s32 %s44, 1
    %p48 = scmp.eq.s32.totalorder %s10, 2
    %p49 = scmp.ne.s32.totalorder %s44, %s46
    %p50 = scmp.eq.s32.totalorder %s10, 0
    %p51 = por %p49, %p50
    %p52 = scmp.ne.s32.totalorder %s44, %s46
    %p53 = scmp.eq.s32.totalorder %s15, 2
    %p54 = por %p52, %p53
    %p55 = scmp.ne.s32.totalorder %s46, %s47
    %p56 = scmp.eq.s32.totalorder %s15, 0
    %p57 = por %p55, %p56
    %p58 = scmp.ne.s32.totalorder %s46, %s47
    %p59 = scmp.eq.s32.totalorder %s16, 2
    %p60 = por %p58, %p59
    %p62 = scmp.ne.s32.totalorder %s47, %s61
    %p63 = scmp.eq.s32.totalorder %s16, 0
    %p64 = por %p62, %p63
    %s65 = ssub.s32 %s10, %s17
    %p66 = scmp.eq.s32.totalorder %s65, 0
    %s68 = sadd.s32 %s67, 1
    %s69 = scalar_select %p66, %s67, %s68
    %p72 = pneg %p66
    %p73 = scmp.eq.s32.totalorder %s10, 2
    %p74 = por %p72, %p73
    %p75 = scmp.ne.s32.totalorder %s67, %s70
    %p76 = scmp.eq.s32.totalorder %s10, 0
    %p77 = por %p75, %p76
    %p78 = scmp.ne.s32.totalorder %s67, %s70
    %p79 = scmp.eq.s32.totalorder %s15, 2
    %p80 = por %p78, %p79
    %p81 = scmp.ne.s32.totalorder %s70, %s71
    %p82 = scmp.eq.s32.totalorder %s15, 0
    %p83 = por %p81, %p82
    %p84 = scmp.ne.s32.totalorder %s70, %s71
    %p85 = scmp.eq.s32.totalorder %s16, 2
    %p86 = por %p84, %p85
    %p88 = scmp.ne.s32.totalorder %s71, %s87
    %p89 = scmp.eq.s32.totalorder %s16, 0
    %p90 = por %p88, %p89
    %s91 = ssub.s32 %s10, %s17
    %p92 = scmp.eq.s32.totalorder %s91, 0
    %s94 = sadd.s32 %s93, 1
    %s95 = scalar_select %p92, %s93, %s94
    %p98 = pneg %p92
    %p99 = scmp.eq.s32.totalorder %s10, 2
    %p100 = por %p98, %p99
    %p101 = scmp.ne.s32.totalorder %s93, %s96
    %p102 = scmp.eq.s32.totalorder %s10, 0
    %p103 = por %p101, %p102
    %p104 = scmp.ne.s32.totalorder %s93, %s96
    %p105 = scmp.eq.s32.totalorder %s15, 2
    %p106 = por %p104, %p105
    %p107 = scmp.ne.s32.totalorder %s96, %s97
    %p108 = scmp.eq.s32.totalorder %s15, 0
    %p109 = por %p107, %p108
    %p110 = scmp.ne.s32.totalorder %s96, %s97
    %p111 = scmp.eq.s32.totalorder %s16, 2
    %p112 = por %p110, %p111
    %p114 = scmp.ne.s32.totalorder %s97, %s113
    %p115 = scmp.eq.s32.totalorder %s16, 0
    %p116 = por %p114, %p115
    %p117 = scmp.le.s32.totalorder 1, %s10
    %p118 = scmp.lt.s32.totalorder %s10, 4
    %p119 = pnand %p117, %p118
    %p120 = pneg %p119
    // Predicated region
    $region9: #{tpu_custom_call.1} parent=5 // pred_check
      _
    $region10: #{tpu_custom_call.1} parent=5 // pred_check_branch
      %122 = sbr.rel (%p119) target = $region12
    $region11: #{tpu_custom_call.1} parent=5 // pred_region
      %s123 = ssub.s32 %s10, 1
      // Predicated region
      $region13: #{tpu_custom_call.1} parent=11 // pred_check
        %p124 = pneg %p57
      $region14: #{tpu_custom_call.1} parent=11 // pred_check_branch
        %126 = sbr.rel (%p124) target = $region16
      $region15: #{tpu_custom_call.1} parent=11 // pred_region
        _
      $region16: #{tpu_custom_call.1} parent=11 // pred_fallthru
        _
    $region12: #{tpu_custom_call.1} parent=5 // pred_fallthru
      _
    %p127 = scmp.lt.s32.totalorder %s10, 3
    // Predicated region
    $region17: #{tpu_custom_call.1} parent=5 // pred_check
      %p128 = pneg %p127
    $region18: #{tpu_custom_call.1} parent=5 // pred_check_branch
      %130 = sbr.rel (%p128) target = $region20
    $region19: #{tpu_custom_call.1} parent=5 // pred_region
      // Predicated region
      $region21: #{tpu_custom_call.1} parent=19 // pred_check
        %p131 = pneg %p30
      $region22: #{tpu_custom_call.1} parent=19 // pred_check_branch
        %133 = sbr.rel (%p131) target = $region24
      $region23: #{tpu_custom_call.1} parent=19 // pred_region
        %s134 = smul.u32 2, %s10
        %p135 = scmp.lt.s32.totalorder %s134, 5
        %s136 = scalar_select %p135, %s134, 5
        %s137 = smul.addr %s136, 9
        %s138 = smul.addr %s137, 8
        %s139 = scalar_lea.vmem %s0, %s138
        %s140 = smul.u32 2, %s10
      $region24: #{tpu_custom_call.1} parent=19 // pred_fallthru
        _
    $region20: #{tpu_custom_call.1} parent=5 // pred_fallthru
      _
    %p141 = scmp.le.s32.totalorder 1, %s10
    %p142 = scmp.lt.s32.totalorder %s10, 4
    %p143 = pnand %p141, %p142
    %p144 = pneg %p143
    // Predicated region
    $region25: #{tpu_custom_call.1} parent=5 // pred_check
      _
    $region26: #{tpu_custom_call.1} parent=5 // pred_check_branch
      %146 = sbr.rel (%p143) target = $region28
    $region27: #{tpu_custom_call.1} parent=5 // pred_region
      %s147 = ssub.s32 %s10, 1
      %s148 = smul.u32 2, %s15
      %p149 = scmp.lt.s32.totalorder %s148, 5
      %s150 = scalar_select %p149, %s148, 5
      %s151 = smul.addr %s150, 9
      %s152 = smul.addr %s151, 8
      %s153 = scalar_lea.vmem %s0, %s152
      %p154 = pneg %p36
      %p155 = pneg %p33
      %p156 = pneg %p57
      %p157 = pneg %p54
      %p158 = pneg %p83
      %p159 = pneg %p80
      %s160 = smul.u32 2, %s15
      %p161 = scmp.lt.s32.totalorder %s160, 5
      %s162 = scalar_select %p161, %s160, 5
      %s163 = smul.addr %s162, 8
      %s164 = scalar_lea.vmem %s2, %s163
      %p165 = pneg %p109
      %p166 = pneg %p106
      %s167 = smul.u32 2, %s15
      %p168 = scmp.lt.s32.totalorder %s167, 5
      %s169 = scalar_select %p168, %s167, 5
      %s170 = smul.addr %s169, 8
      %s171 = scalar_lea.vmem %s3, %s170
      %s172 = smul.u32 2, %s15
      %p173 = scmp.lt.s32.totalorder %s172, 5
      %s174 = scalar_select %p173, %s172, 5
      %s175 = smul.addr %s174, 9
      %s176 = smul.addr %s175, 8
      %s177 = scalar_lea.vmem %s0, %s176
      %s178 = smul.u32 2, %s15
      %s179 = smul.u32 2, %s15
      %p180 = scmp.lt.s32.totalorder %s179, 5
      %s181 = scalar_select %p180, %s179, 5
      %s182 = smul.addr %s181, 8
      %s183 = scalar_lea.vmem %s2, %s182
      %s184 = smul.u32 2, %s15
      %s185 = smul.u32 2, %s15
      %p186 = scmp.lt.s32.totalorder %s185, 5
      %s187 = scalar_select %p186, %s185, 5
      %s188 = smul.addr %s187, 8
      %s189 = scalar_lea.vmem %s3, %s188
      %s190 = smul.u32 2, %s15
      %v191 = vld [vmem:[%s177] sm:$0xff]
      %v192 = vld [vmem:[%s177 + $0x8] sm:$0xff]
      %v193 = vld [vmem:[%s177 + $0x10] sm:$0xff]
      %v194 = vld [vmem:[%s177 + $0x18] sm:$0xff]
      %v195 = vld [vmem:[%s177 + $0x20] sm:$0xff]
      %v196 = vld [vmem:[%s177 + $0x28] sm:$0xff]
      %v197 = vld [vmem:[%s177 + $0x30] sm:$0xff]
      %v198 = vld [vmem:[%s177 + $0x38] sm:$0xff]
      %v199 = vld [vmem:[%s177 + $0x40] sm:$0xff]
      %v200 = vld [vmem:[%s177 + $0x48] sm:$0xff]
      %v201 = vld [vmem:[%s177 + $0x50] sm:$0xff]
      %v202 = vld [vmem:[%s177 + $0x58] sm:$0xff]
      %v203 = vld [vmem:[%s177 + $0x60] sm:$0xff]
      %v204 = vld [vmem:[%s177 + $0x68] sm:$0xff]
      %v205 = vld [vmem:[%s177 + $0x70] sm:$0xff]
      %v206 = vld [vmem:[%s177 + $0x78] sm:$0xff]
      %v207 = vld [vmem:[%s177 + $0x80] sm:$0xff]
      %v208 = vld [vmem:[%s177 + $0x88] sm:$0xff]
      %v209 = vld [vmem:[%s1] sm:$0xff]
      %v210 = vld [vmem:[%s1 + $0x8] sm:$0xff]
      %v211 = vld [vmem:[%s1 + $0x10] sm:$0xff]
      %v212 = vld [vmem:[%s1 + $0x18] sm:$0xff]
      %v213 = vld [vmem:[%s1 + $0x20] sm:$0xff]
      %v214 = vld [vmem:[%s1 + $0x28] sm:$0xff]
      %v215 = vld [vmem:[%s1 + $0x30] sm:$0xff]
      %v216 = vld [vmem:[%s1 + $0x38] sm:$0xff]
      %v217 = vld [vmem:[%s1 + $0x40] sm:$0xff]
      %v218 = vld [vmem:[%s1 + $0x48] sm:$0xff]
      %v219 = vld [vmem:[%s1 + $0x50] sm:$0xff]
      %v220 = vld [vmem:[%s1 + $0x58] sm:$0xff]
      %v221 = vld [vmem:[%s1 + $0x60] sm:$0xff]
      %v222 = vld [vmem:[%s1 + $0x68] sm:$0xff]
      %v223 = vld [vmem:[%s1 + $0x70] sm:$0xff]
      %v224 = vld [vmem:[%s1 + $0x78] sm:$0xff]
      %v225 = vld [vmem:[%s1 + $0x80] sm:$0xff]
      %v226 = vld [vmem:[%s1 + $0x88] sm:$0xff]
      %v227 = vld [vmem:[%s1 + $0x90] sm:$0xff]
      %v228 = vld [vmem:[%s1 + $0x98] sm:$0xff]
      %v229 = vld [vmem:[%s1 + $0xa0] sm:$0xff]
      %v230 = vld [vmem:[%s1 + $0xa8] sm:$0xff]
      %v231 = vld [vmem:[%s1 + $0xb0] sm:$0xff]
      %v232 = vld [vmem:[%s1 + $0xb8] sm:$0xff]
      %v233 = vld [vmem:[%s1 + $0xc0] sm:$0xff]
      %v234 = vld [vmem:[%s1 + $0xc8] sm:$0xff]
      %v235 = vld [vmem:[%s1 + $0xd0] sm:$0xff]
      %v236 = vld [vmem:[%s1 + $0xd8] sm:$0xff]
      %v237 = vld [vmem:[%s1 + $0xe0] sm:$0xff]
      %v238 = vld [vmem:[%s1 + $0xe8] sm:$0xff]
      %v239 = vld [vmem:[%s1 + $0xf0] sm:$0xff]
      %v240 = vld [vmem:[%s1 + $0xf8] sm:$0xff]
      %v241 = vld [vmem:[%s1 + $0x100] sm:$0xff]
      %v242 = vld [vmem:[%s1 + $0x108] sm:$0xff]
      %v243 = vld [vmem:[%s1 + $0x110] sm:$0xff]
      %v244 = vld [vmem:[%s1 + $0x118] sm:$0xff]
      %v245 = vld [vmem:[%s1 + $0x120] sm:$0xff]
      %v246 = vld [vmem:[%s1 + $0x128] sm:$0xf]
      %vm247 = vcmask 359424
      %v249 = vsel %vm247, %v193, 0
      %v252 = vsel %vm247, %v196, 0
      %v255 = vsel %vm247, %v199, 0
      %v258 = vsel %vm247, %v202, 0
      %v261 = vsel %vm247, %v205, 0
      %v264 = vsel %vm247, %v208, 0
      %vm266 = vcmask 1043456
      %v268 = vsel %vm266, %v246, 0
      %270 = vmatpush.msra.mxu0 %v224
      %271 = vmatpush.msra.mxu0 %v223
      %272 = vmatpush.msra.mxu0 %v222
      %273 = vmatpush.msra.mxu0 %v221
      %274 = vmatpush.msra.mxu0 %v220
      %275 = vmatpush.msra.mxu0 %v219
      %276 = vmatpush.msra.mxu0 %v218
      %277 = vmatpush.msra.mxu0 %v217
      %278 = vmatpush.msra.mxu0 %v216
      %279 = vmatpush.msra.mxu0 %v215
      %280 = vmatpush.msra.mxu0 %v214
      %281 = vmatpush.msra.mxu0 %v213
      %282 = vmatpush.msra.mxu0 %v212
      %283 = vmatpush.msra.mxu0 %v211
      %284 = vmatpush.msra.mxu0 %v210
      %285 = vmatpush.msra.mxu0 %v209
      %286 = vmatmul.f32.gmra.mxu0 %v191
      %v287 = vpop.f32.mrf.mxu0
      %v288 = vadd.f32 0.0, %v287
      %289 = vmatmul.f32.gmra.mxu0 %v194
      %v290 = vpop.f32.mrf.mxu0
      %v291 = vadd.f32 0.0, %v290
      %292 = vmatmul.f32.gmra.mxu0 %v197
      %v293 = vpop.f32.mrf.mxu0
      %v294 = vadd.f32 0.0, %v293
      %295 = vmatmul.f32.gmra.mxu0 %v200
      %v296 = vpop.f32.mrf.mxu0
      %v297 = vadd.f32 0.0, %v296
      %298 = vmatmul.f32.gmra.mxu0 %v203
      %v299 = vpop.f32.mrf.mxu0
      %v300 = vadd.f32 0.0, %v299
      %301 = vmatmul.f32.gmra.mxu0 %v206
      %v302 = vpop.f32.mrf.mxu0
      %v303 = vadd.f32 0.0, %v302
      %304 = vdwg.mxu0
      %305 = vmatpush.msra.mxu0 %v240
      %306 = vmatpush.msra.mxu0 %v239
      %307 = vmatpush.msra.mxu0 %v238
      %308 = vmatpush.msra.mxu0 %v237
      %309 = vmatpush.msra.mxu0 %v236
      %310 = vmatpush.msra.mxu0 %v235
      %311 = vmatpush.msra.mxu0 %v234
      %312 = vmatpush.msra.mxu0 %v233
      %313 = vmatpush.msra.mxu0 %v232
      %314 = vmatpush.msra.mxu0 %v231
      %315 = vmatpush.msra.mxu0 %v230
      %316 = vmatpush.msra.mxu0 %v229
      %317 = vmatpush.msra.mxu0 %v228
      %318 = vmatpush.msra.mxu0 %v227
      %319 = vmatpush.msra.mxu0 %v226
      %320 = vmatpush.msra.mxu0 %v225
      %321 = vmatmul.f32.gmra.mxu0 %v192
      %v322 = vpop.f32.mrf.mxu0
      %v323 = vadd.f32 %v288, %v322
      %324 = vmatmul.f32.gmra.mxu0 %v195
      %v325 = vpop.f32.mrf.mxu0
      %v326 = vadd.f32 %v291, %v325
      %327 = vmatmul.f32.gmra.mxu0 %v198
      %v328 = vpop.f32.mrf.mxu0
      %v329 = vadd.f32 %v294, %v328
      %330 = vmatmul.f32.gmra.mxu0 %v201
      %v331 = vpop.f32.mrf.mxu0
      %v332 = vadd.f32 %v297, %v331
      %333 = vmatmul.f32.gmra.mxu0 %v204
      %v334 = vpop.f32.mrf.mxu0
      %v335 = vadd.f32 %v300, %v334
      %336 = vmatmul.f32.gmra.mxu0 %v207
      %v337 = vpop.f32.mrf.mxu0
      %v338 = vadd.f32 %v303, %v337
      %339 = vdwg.mxu0
      %340 = vmatpush.msra.mxu0 0.0
      %341 = vmatpush.msra.mxu0 0.0
      %342 = vmatpush.msra.mxu0 0.0
      %343 = vmatpush.msra.mxu0 0.0
      %344 = vmatpush.msra.mxu0 0.0
      %345 = vmatpush.msra.mxu0 0.0
      %346 = vmatpush.msra.mxu0 0.0
      %347 = vmatpush.msra.mxu0 0.0
      %348 = vmatpush.msra.mxu0 0.0
      %349 = vmatpush.msra.mxu0 0.0
      %350 = vmatpush.msra.mxu0 %v268
      %351 = vmatpush.msra.mxu0 %v245
      %352 = vmatpush.msra.mxu0 %v244
      %353 = vmatpush.msra.mxu0 %v243
      %354 = vmatpush.msra.mxu0 %v242
      %355 = vmatpush.msra.mxu0 %v241
      %356 = vmatmul.f32.gmra.mxu0 %v249
      %v357 = vpop.f32.mrf.mxu0
      %v358 = vadd.f32 %v323, %v357
      %359 = vmatmul.f32.gmra.mxu0 %v252
      %v360 = vpop.f32.mrf.mxu0
      %v361 = vadd.f32 %v326, %v360
      %362 = vmatmul.f32.gmra.mxu0 %v255
      %v363 = vpop.f32.mrf.mxu0
      %v364 = vadd.f32 %v329, %v363
      %365 = vmatmul.f32.gmra.mxu0 %v258
      %v366 = vpop.f32.mrf.mxu0
      %v367 = vadd.f32 %v332, %v366
      %368 = vmatmul.f32.gmra.mxu0 %v261
      %v369 = vpop.f32.mrf.mxu0
      %v370 = vadd.f32 %v335, %v369
      %371 = vmatmul.f32.gmra.mxu0 %v264
      %v372 = vpop.f32.mrf.mxu0
      %v373 = vadd.f32 %v338, %v372
      %374 = vdwg.mxu0
      %375 = vxpose.xlu0.b32.start [1/16] %v358, 128
      %376 = vxpose.xlu0.b32.cont [2/16] %v361, 128
      %377 = vxpose.xlu0.b32.cont [3/16] %v364, 128
      %378 = vxpose.xlu0.b32.cont [4/16] 0.0, 128
      %379 = vxpose.xlu0.b32.cont [5/16] 0.0, 128
      %380 = vxpose.xlu0.b32.cont [6/16] 0.0, 128
      %381 = vxpose.xlu0.b32.cont [7/16] 0.0, 128
      %382 = vxpose.xlu0.b32.cont [8/16] 0.0, 128
      %383 = vxpose.xlu0.b32.cont [9/16] 0.0, 128
      %384 = vxpose.xlu0.b32.cont [10/16] 0.0, 128
      %385 = vxpose.xlu0.b32.cont [11/16] 0.0, 128
      %386 = vxpose.xlu0.b32.cont [12/16] 0.0, 128
      %387 = vxpose.xlu0.b32.cont [13/16] 0.0, 128
      %388 = vxpose.xlu0.b32.cont [14/16] 0.0, 128
      %389 = vxpose.xlu0.b32.cont [15/16] 0.0, 128
      %390 = vxpose.xlu0.b32.end [16/16] 0.0, 128
      %v391 = vpop.trf.xlu0
      %v392 = vpop.trf.xlu0
      %v393 = vpop.trf.xlu0
      %v394 = vpop.trf.xlu0
      %v395 = vpop.trf.xlu0
      %v396 = vpop.trf.xlu0
      %v397 = vpop.trf.xlu0
      %v398 = vpop.trf.xlu0
      %v399 = vpop.trf.xlu0
      %v400 = vpop.trf.xlu0
      %v401 = vpop.trf.xlu0
      %v402 = vpop.trf.xlu0
      %v403 = vpop.trf.xlu0
      %v404 = vpop.trf.xlu0
      %v405 = vpop.trf.xlu0
      %v406 = vpop.trf.xlu0
      %407 = vxpose.xlu0.b32.start [1/16] %v367, 128
      %408 = vxpose.xlu0.b32.cont [2/16] %v370, 128
      %409 = vxpose.xlu0.b32.cont [3/16] %v373, 128
      %410 = vxpose.xlu0.b32.cont [4/16] 0.0, 128
      %411 = vxpose.xlu0.b32.cont [5/16] 0.0, 128
      %412 = vxpose.xlu0.b32.cont [6/16] 0.0, 128
      %413 = vxpose.xlu0.b32.cont [7/16] 0.0, 128
      %414 = vxpose.xlu0.b32.cont [8/16] 0.0, 128
      %415 = vxpose.xlu0.b32.cont [9/16] 0.0, 128
      %416 = vxpose.xlu0.b32.cont [10/16] 0.0, 128
      %417 = vxpose.xlu0.b32.cont [11/16] 0.0, 128
      %418 = vxpose.xlu0.b32.cont [12/16] 0.0, 128
      %419 = vxpose.xlu0.b32.cont [13/16] 0.0, 128
      %420 = vxpose.xlu0.b32.cont [14/16] 0.0, 128
      %421 = vxpose.xlu0.b32.cont [15/16] 0.0, 128
      %422 = vxpose.xlu0.b32.end [16/16] 0.0, 128
      %v423 = vpop.trf.xlu0
      %v424 = vpop.trf.xlu0
      %v425 = vpop.trf.xlu0
      %v426 = vpop.trf.xlu0
      %v427 = vpop.trf.xlu0
      %v428 = vpop.trf.xlu0
      %v429 = vpop.trf.xlu0
      %v430 = vpop.trf.xlu0
      %v431 = vpop.trf.xlu0
      %v432 = vpop.trf.xlu0
      %v433 = vpop.trf.xlu0
      %v434 = vpop.trf.xlu0
      %v435 = vpop.trf.xlu0
      %v436 = vpop.trf.xlu0
      %v437 = vpop.trf.xlu0
      %v438 = vpop.trf.xlu0
      %441 = vrot.lane.b32.xlu0 %v391, 1
      %v442 = vpop.permute.xlu0 %441
      %443 = vrot.lane.b32.xlu0 %v423, 1
      %v444 = vpop.permute.xlu0 %443
      %vm447 = vcmask 7168
      %v448 = vsel %vm447, 0.0, %v442
      %v449 = vsel %vm447, 0.0, %v444
      %v452 = vrot.slane %v448, 3
      %v453 = vrot.slane %v449, 3
      %v456 = vadd.f32 %v391, %v452
      %v457 = vadd.f32 %v392, %v452
      %v458 = vadd.f32 %v423, %v453
      %v459 = vadd.f32 %v424, %v453
      %462 = vrot.lane.b32.xlu0 %v392, 127
      %v463 = vpop.permute.xlu0 %462
      %464 = vrot.lane.b32.xlu0 %v424, 127
      %v465 = vpop.permute.xlu0 %464
      %vm468 = vcmask 187392
      %v469 = vsel %vm468, %v463, 0.0
      %v470 = vsel %vm468, %v465, 0.0
      %v473 = vrot.slane %v469, 5
      %v474 = vrot.slane %v470, 5
      %v477 = vadd.f32 %v456, %v473
      %v478 = vadd.f32 %v457, %v473
      %v479 = vadd.f32 %v458, %v474
      %v480 = vadd.f32 %v459, %v474
      %v481 = vlaneseq
      %v482 = vand.u32 %v481, 127
      %vm483 = vcmp.lt.s32.totalorder %v482, 19
      %v484 = vsel %vm483, %v477, -1e+30
      %v485 = vsel %vm483, %v478, -1e+30
      %v486 = vsel %vm483, %v479, -1e+30
      %v487 = vsel %vm483, %v480, -1e+30
      %vm488 = vcmask 195589
      %v489 = vsel %vm488, %v484, -inf
      %490 = vmax.xlane.f32.xlu0 %v489
      %v491 = vpop.xlane.xlu0 %490
      %vm492 = vcmask 189440
      %v493 = vsel %vm492, %v485, -inf
      %494 = vmax.xlane.f32.xlu0 %v493
      %v495 = vpop.xlane.xlu0 %494
      %v496 = vsel %vm488, %v486, -inf
      %497 = vmax.xlane.f32.xlu0 %v496
      %v498 = vpop.xlane.xlu0 %497
      %v499 = vsel %vm492, %v487, -inf
      %500 = vmax.xlane.f32.xlu0 %v499
      %v501 = vpop.xlane.xlu0 %500
      %v502 = vsub.f32 %v484, %v491
      %v503 = vsub.f32 %v485, %v495
      %v504 = vsub.f32 %v486, %v498
      %v505 = vsub.f32 %v487, %v501
      %v506 = vmul.f32 %v502, 1.442695
      %v507 = vpow.pop %v506
      %v508 = vmul.f32 %v503, 1.442695
      %v509 = vpow.pop %v508
      %v510 = vmul.f32 %v504, 1.442695
      %v511 = vpow.pop %v510
      %v512 = vmul.f32 %v505, 1.442695
      %v513 = vpow.pop %v512
      %v514 = vsel %vm488, %v507, 0.0
      %515 = vadd.xlane.f32.xlu0 %v514
      %v516 = vpop.xlane.xlu0 %515
      %v517 = vsel %vm492, %v509, 0.0
      %518 = vadd.xlane.f32.xlu0 %v517
      %v519 = vpop.xlane.xlu0 %518
      %v520 = vsel %vm488, %v511, 0.0
      %521 = vadd.xlane.f32.xlu0 %v520
      %v522 = vpop.xlane.xlu0 %521
      %v523 = vsel %vm492, %v513, 0.0
      %524 = vadd.xlane.f32.xlu0 %v523
      %v525 = vpop.xlane.xlu0 %524
      %v526 = vrcp.pop %v516
      %v527 = vmul.f32 %v516, %v526
      %v528 = vsub.f32 1.0, %v527
      %v529 = vmul.f32 %v526, %v528
      %v530 = vadd.f32 %v526, %v529
      %vm531 = vweird.f32 %v516
      %vm532 = vweird.f32 %v526
      %vm533 = vmor %vm531, %vm532
      %v534 = vsel %vm533, %v526, %v530
      %v535 = vand.u32 2147483647, %v516
      %vm536 = vcmp.eq.f32.partialorder %v535, 8.507059e+37
      %v537 = vand.u32 %v516, 2147483648
      %v538 = vor.u32 1.1754944e-38, %v537
      %v539 = vsel %vm536, %v538, %v534
      %v540 = vmul.f32 %v507, %v539
      %v541 = vrcp.pop %v519
      %v542 = vmul.f32 %v519, %v541
      %v543 = vsub.f32 1.0, %v542
      %v544 = vmul.f32 %v541, %v543
      %v545 = vadd.f32 %v541, %v544
      %vm546 = vweird.f32 %v519
      %vm547 = vweird.f32 %v541
      %vm548 = vmor %vm546, %vm547
      %v549 = vsel %vm548, %v541, %v545
      %v550 = vand.u32 2147483647, %v519
      %vm551 = vcmp.eq.f32.partialorder %v550, 8.507059e+37
      %v552 = vand.u32 %v519, 2147483648
      %v553 = vor.u32 1.1754944e-38, %v552
      %v554 = vsel %vm551, %v553, %v549
      %v555 = vmul.f32 %v509, %v554
      %v556 = vrcp.pop %v522
      %v557 = vmul.f32 %v522, %v556
      %v558 = vsub.f32 1.0, %v557
      %v559 = vmul.f32 %v556, %v558
      %v560 = vadd.f32 %v556, %v559
      %vm561 = vweird.f32 %v522
      %vm562 = vweird.f32 %v556
      %vm563 = vmor %vm561, %vm562
      %v564 = vsel %vm563, %v556, %v560
      %v565 = vand.u32 2147483647, %v522
      %vm566 = vcmp.eq.f32.partialorder %v565, 8.507059e+37
      %v567 = vand.u32 %v522, 2147483648
      %v568 = vor.u32 1.1754944e-38, %v567
      %v569 = vsel %vm566, %v568, %v564
      %v570 = vmul.f32 %v511, %v569
      %v571 = vrcp.pop %v525
      %v572 = vmul.f32 %v525, %v571
      %v573 = vsub.f32 1.0, %v572
      %v574 = vmul.f32 %v571, %v573
      %v575 = vadd.f32 %v571, %v574
      %vm576 = vweird.f32 %v525
      %vm577 = vweird.f32 %v571
      %vm578 = vmor %vm576, %vm577
      %v579 = vsel %vm578, %v571, %v575
      %v580 = vand.u32 2147483647, %v525
      %vm581 = vcmp.eq.f32.partialorder %v580, 8.507059e+37
      %v582 = vand.u32 %v525, 2147483648
      %v583 = vor.u32 1.1754944e-38, %v582
      %v584 = vsel %vm581, %v583, %v579
      %v585 = vmul.f32 %v513, %v584
      %586 = vst.msk [vmem:[%s183 - $0x5] sm:$0xe0] %vm488, %v540
      %587 = vst.msk [vmem:[%s183 + $0x3] sm:$0x3] %vm492, %v555
      %588 = vst.msk [vmem:[%s183 + $0x3] sm:$0xe0] %vm488, %v570
      %589 = vst.msk [vmem:[%s183 + $0xb] sm:$0x3] %vm492, %v585
      %vm592 = vcmask 1042432
      %v593 = vrot.slane %v540, 5
      %v594 = vrot.slane %v555, 5
      %v595 = vsel %vm592, %v593, %v594
      %vm596 = vcmask 195584
      %v597 = vsel %vm596, %v595, 0
      %599 = vmatpush.msra.mxu0 0.0
      %600 = vmatpush.msra.mxu0 0.0
      %601 = vmatpush.msra.mxu0 0.0
      %602 = vmatpush.msra.mxu0 0.0
      %603 = vmatpush.msra.mxu0 0.0
      %604 = vmatpush.msra.mxu0 0.0
      %605 = vmatpush.msra.mxu0 0.0
      %606 = vmatpush.msra.mxu0 0.0
      %607 = vmatpush.msra.mxu0 0.0
      %608 = vmatpush.msra.mxu0 0.0
      %609 = vmatpush.msra.mxu0 0.0
      %610 = vmatpush.msra.mxu0 0.0
      %611 = vmatpush.msra.mxu0 0.0
      %612 = vmatpush.msra.mxu0 %v364
      %613 = vmatpush.msra.mxu0 %v361
      %614 = vmatpush.msra.mxu0 %v358
      %615 = vmatmul.f32.gmra.mxu0 %v597
      %v616 = vpop.f32.mrf.mxu0
      %v617 = vadd.f32 0.0, %v616
      %618 = vdwg.mxu0
      %v621 = vrot.slane %v570, 5
      %v622 = vrot.slane %v585, 5
      %v623 = vsel %vm592, %v621, %v622
      %v624 = vsel %vm596, %v623, 0
      %626 = vmatpush.msra.mxu0 0.0
      %627 = vmatpush.msra.mxu0 0.0
      %628 = vmatpush.msra.mxu0 0.0
      %629 = vmatpush.msra.mxu0 0.0
      %630 = vmatpush.msra.mxu0 0.0
      %631 = vmatpush.msra.mxu0 0.0
      %632 = vmatpush.msra.mxu0 0.0
      %633 = vmatpush.msra.mxu0 0.0
      %634 = vmatpush.msra.mxu0 0.0
      %635 = vmatpush.msra.mxu0 0.0
      %636 = vmatpush.msra.mxu0 0.0
      %637 = vmatpush.msra.mxu0 0.0
      %638 = vmatpush.msra.mxu0 0.0
      %639 = vmatpush.msra.mxu0 %v373
      %640 = vmatpush.msra.mxu0 %v370
      %641 = vmatpush.msra.mxu0 %v367
      %642 = vmatmul.f32.gmra.mxu0 %v624
      %v643 = vpop.f32.mrf.mxu0
      %v644 = vadd.f32 0.0, %v643
      %645 = vdwg.mxu0
      %648 = vrot.lane.b32.xlu0 %v617, 113
      %v649 = vpop.permute.xlu0 %648
      %650 = vrot.lane.b32.xlu0 %v644, 113
      %v651 = vpop.permute.xlu0 %650
      %vm654 = vcmask 73728
      %655 = vst.msk [vmem:[%s189] sm:$0x1] %vm654, %v649
      %656 = vst.msk [vmem:[%s189 + $0x8] sm:$0x1] %vm654, %v651
      %657 = vrot.lane.b32.xlu0 %v617, 103
      %v658 = vpop.permute.xlu0 %657
      %659 = vrot.lane.b32.xlu0 %v644, 103
      %v660 = vpop.permute.xlu0 %659
      %vm663 = vcmask 74753
      %664 = vst.msk [vmem:[%s189] sm:$0x2] %vm663, %v658
      %665 = vst.msk [vmem:[%s189 + $0x8] sm:$0x2] %vm663, %v660
      %666 = vrot.lane.b32.xlu0 %v617, 93
      %v667 = vpop.permute.xlu0 %666
      %668 = vrot.lane.b32.xlu0 %v644, 93
      %v669 = vpop.permute.xlu0 %668
      %vm672 = vcmask 75778
      %673 = vst.msk [vmem:[%s189] sm:$0x4] %vm672, %v667
      %674 = vst.msk [vmem:[%s189 + $0x8] sm:$0x4] %vm672, %v669
      %675 = vrot.lane.b32.xlu0 %v617, 83
      %v676 = vpop.permute.xlu0 %675
      %677 = vrot.lane.b32.xlu0 %v644, 83
      %v678 = vpop.permute.xlu0 %677
      %vm681 = vcmask 76803
      %682 = vst.msk [vmem:[%s189] sm:$0x8] %vm681, %v676
      %683 = vst.msk [vmem:[%s189 + $0x8] sm:$0x8] %vm681, %v678
      %684 = vrot.lane.b32.xlu0 %v617, 73
      %v685 = vpop.permute.xlu0 %684
      %686 = vrot.lane.b32.xlu0 %v644, 73
      %v687 = vpop.permute.xlu0 %686
      %vm690 = vcmask 77828
      %691 = vst.msk [vmem:[%s189] sm:$0x10] %vm690, %v685
      %692 = vst.msk [vmem:[%s189 + $0x8] sm:$0x10] %vm690, %v687
      %s693 = smul.u32 2, %s15
      %p694 = scmp.lt.s32.totalorder %s693, 5
      %s695 = scalar_select %p694, %s693, 5
      %s696 = smul.addr %s695, 8
      %s697 = scalar_lea.vmem %s2, %s696
      %s698 = smul.u32 2, %s15
      %p699 = scmp.lt.s32.totalorder %s698, 5
      %s700 = scalar_select %p699, %s698, 5
      %s701 = smul.addr %s700, 8
      %s702 = scalar_lea.vmem %s3, %s701
      // Predicated region
      $region29: #{tpu_custom_call.1} parent=27 // pred_check
        %p703 = pneg %p80
      $region30: #{tpu_custom_call.1} parent=27 // pred_check_branch
        %705 = sbr.rel (%p703) target = $region32
      $region31: #{tpu_custom_call.1} parent=27 // pred_region
        %s706 = smul.u32 2, %s15
      $region32: #{tpu_custom_call.1} parent=27 // pred_fallthru
        _
      // Predicated region
      $region33: #{tpu_custom_call.1} parent=27 // pred_check
        %p707 = pneg %p106
      $region34: #{tpu_custom_call.1} parent=27 // pred_check_branch
        %709 = sbr.rel (%p707) target = $region36
      $region35: #{tpu_custom_call.1} parent=27 // pred_region
        %s710 = smul.u32 2, %s15
      $region36: #{tpu_custom_call.1} parent=27 // pred_fallthru
        _
    $region28: #{tpu_custom_call.1} parent=5 // pred_fallthru
      _
    %p711 = scmp.le.s32.totalorder 2, %s10
    // Predicated region
    $region37: #{tpu_custom_call.1} parent=5 // pred_check
      %p712 = pneg %p711
    $region38: #{tpu_custom_call.1} parent=5 // pred_check_branch
      %714 = sbr.rel (%p712) target = $region40
    $region39: #{tpu_custom_call.1} parent=5 // pred_region
      %s715 = ssub.s32 %s10, 2
      // Predicated region
      $region41: #{tpu_custom_call.1} parent=39 // pred_check
        %p716 = pneg %p86
      $region42: #{tpu_custom_call.1} parent=39 // pred_check_branch
        %718 = sbr.rel (%p716) target = $region44
      $region43: #{tpu_custom_call.1} parent=39 // pred_region
        %s719 = smul.u32 2, %s16
        %p720 = scmp.lt.s32.totalorder %s719, 5
        %s721 = scalar_select %p720, %s719, 5
        %s722 = smul.addr %s721, 8
        %s723 = scalar_lea.vmem %s2, %s722
      $region44: #{tpu_custom_call.1} parent=39 // pred_fallthru
        _
      // Predicated region
      $region45: #{tpu_custom_call.1} parent=39 // pred_check
        %p724 = pneg %p112
      $region46: #{tpu_custom_call.1} parent=39 // pred_check_branch
        %726 = sbr.rel (%p724) target = $region48
      $region47: #{tpu_custom_call.1} parent=39 // pred_region
        %s727 = smul.u32 2, %s16
        %p728 = scmp.lt.s32.totalorder %s727, 5
        %s729 = scalar_select %p728, %s727, 5
        %s730 = smul.addr %s729, 8
        %s731 = scalar_lea.vmem %s3, %s730
      $region48: #{tpu_custom_call.1} parent=39 // pred_fallthru
        _
    $region40: #{tpu_custom_call.1} parent=5 // pred_fallthru
      _
  $region6: #{tpu_custom_call.1} parent=0 // loop_footer
    %s14 = sadd.s32 1, %s10
  $region7: #{tpu_custom_call.1} parent=0 // loop_footer_branch
    %9 = sbr.rel target = $region3
  $region8: #{tpu_custom_call.1} parent=0 // loop_exit
    _

</llo_original>
